<compile_context>
chip_gen: v5e
topology: v5e:2x2
jax: 0.10.0
libtpu: 0.0.40
codegen_flags: <defaults>
</compile_context>

<pallas_src>
import functools
import re

import jax
import jax.numpy as jnp
from jax.experimental import pallas as pl
from jax.experimental.pallas import tpu as pltpu


def _round_up(a: int, b: int) -> int:
    return (a + b - 1) // b * b


def _tpu_generation() -> int:
    try:
        kind = jax.devices()[0].device_kind
    except Exception:
        return 6
    m = re.search(r"(\d+)", kind)
    return int(m.group(1)) if m else 6


def ffn_config(D: int, H: int) -> dict:
    """Generation-aware tile sizes and VMEM budget (v5e / v6e / v7x)."""
    gen = _tpu_generation()
    if gen >= 7:
        # v7x: 64 MiB VMEM, 3.2 TB/s HBM -> small tiles are already near the
        # compute roofline; 2 TensorCores want at least 2 row tiles.
        tm, tn, cap, min_row_tiles = 256, 256, 56 << 20, 2
    elif gen == 6:
        # v6e: ~640 flops/byte needed to be MXU-bound -> large row tile; 128 MiB VMEM.
        tm, tn, cap, min_row_tiles = 512, 1024, 100 << 20, 1
    else:
        # v5e (and older / unknown): ~240 flops/byte roofline; modest tiles.
        tm, tn, cap, min_row_tiles = 256, 512, 100 << 20, 1
    tn = min(tn, _round_up(H, 128))
    return dict(tm=tm, tn=tn, vmem_cap_bytes=cap, min_row_tiles=min_row_tiles)


def prepare_ffn_params(w1, b1, w2, b2, *, tn, compute_dtype=jnp.bfloat16):
    """One-time pad + cast of the weights (call once, reuse across forward calls).

    w1: (D, H), b1: (H,), w2: (H, D), b2: (D,).
    """
    D, H = w1.shape
    D_pad = _round_up(D, 128)
    H_pad = _round_up(H, tn)
    w1p = jnp.zeros((D_pad, H_pad), compute_dtype).at[:D, :H].set(
        w1.astype(compute_dtype))
    w2p = jnp.zeros((H_pad, D_pad), compute_dtype).at[:H, :D].set(
        w2.astype(compute_dtype))
    b1p = jnp.zeros((1, H_pad), jnp.float32).at[0, :H].set(b1.astype(jnp.float32))
    b2p = jnp.zeros((1, D_pad), jnp.float32).at[0, :D].set(b2.astype(jnp.float32))
    return w1p, b1p, w2p, b2p


def ffn_kernel(x_ref, w1_ref, b1_ref, w2_ref, b2_ref, o_ref, *scratch):
    """One (tm, D_pad) output tile, accumulated over the H (hidden) grid axis.

    If a scratch ref is supplied it is the fp32 accumulator; otherwise o_ref
    itself (fp32 output) is used as the accumulator.
    """
    acc_ref = scratch[0] if scratch else o_ref
    j = pl.program_id(1)

    @pl.when(j == 0)
    def _init():
        acc_ref[...] = jnp.zeros_like(acc_ref)

    # First linear (MXU, bf16 x bf16 -> fp32) + bias + ReLU on the (tm, tn) block.
    h = jnp.dot(x_ref[...], w1_ref[...], preferred_element_type=jnp.float32)
    h = jnp.maximum(h + b1_ref[...], 0.0)

    # Second linear: accumulate this H-chunk's contribution in fp32.
    acc_ref[...] += jnp.dot(
        h.astype(w2_ref.dtype), w2_ref[...], preferred_element_type=jnp.float32
    )

    @pl.when(j == pl.num_programs(1) - 1)
    def _finalize():
        o_ref[...] = (acc_ref[...] + b2_ref[...]).astype(o_ref.dtype)


@functools.partial(
    jax.jit,
    static_argnames=("tm", "tn", "compute_dtype", "vmem_cap_bytes", "min_row_tiles"),
)
def feed_forward(x, w1p, b1p, w2p, b2p, *, tm=256, tn=512,
                 compute_dtype=jnp.bfloat16, vmem_cap_bytes=100 << 20,
                 min_row_tiles=1):
    """x: (B, T, D). w1p/b1p/w2p/b2p: outputs of prepare_ffn_params. Returns (B, T, D)."""
    orig_dtype = x.dtype
    B, T, D = x.shape
    D_pad, H_pad = w1p.shape
    M = B * T

    # Row tile: multiple of 16 (bf16 sublane packing), clamped to the problem size;
    # on multi-TensorCore chips make sure the parallel axis has >= min_row_tiles tiles.
    tm = min(tm, _round_up(M, 16))
    if min_row_tiles >= 2 and M > 16:
        tm = min(tm, max(16, _round_up(-(-M // min_row_tiles), 16)))
    M_pad = _round_up(M, tm)

    tn = min(tn, H_pad)
    assert H_pad % tn == 0, "tn must divide the padded hidden dim (use ffn_config)"
    assert D == D_pad or D < D_pad, "x feature dim larger than prepared weights"

    cbytes = jnp.dtype(compute_dtype).itemsize
    obytes = jnp.dtype(orig_dtype).itemsize

    # Skip the pad copy entirely when everything is already aligned.
    x2d = x.reshape(M, D)
    if M_pad == M and D_pad == D:
        x2d = x2d.astype(compute_dtype)
    else:
        x2d = jnp.zeros((M_pad, D_pad), compute_dtype).at[:M, :D].set(
            x2d.astype(compute_dtype))

    # fp32 outputs accumulate directly in o_ref; bf16 outputs need an fp32 scratch.
    use_scratch = jnp.dtype(orig_dtype) != jnp.dtype(jnp.float32)
    scratch_shapes = [pltpu.VMEM((tm, D_pad), jnp.float32)] if use_scratch else []

    # Explicit VMEM budget from the double-buffered tile footprint.
    footprint = 2 * (
        tm * D_pad * cbytes        # x tile
        + D_pad * tn * cbytes      # W1 tile
        + tn * 4                   # b1 tile (fp32)
        + tn * D_pad * cbytes      # W2 tile
        + D_pad * 4                # b2 (fp32)
        + tm * D_pad * obytes      # output tile
    )
    if use_scratch:
        footprint += tm * D_pad * 4
    vmem_limit = min(vmem_cap_bytes, max(footprint + (8 << 20), 32 << 20))

    # Weights are re-streamed once per row tile.
    n_row_tiles = M_pad // tm
    cost = pl.CostEstimate(
        flops=4 * M_pad * D_pad * H_pad,
        transcendentals=0,
        bytes_accessed=(
            M_pad * D_pad * cbytes
            + n_row_tiles * (2 * D_pad * H_pad * cbytes + (H_pad + D_pad) * 4)
            + M_pad * D_pad * obytes
        ),
    )

    out2d = pl.pallas_call(
        ffn_kernel,
        out_shape=jax.ShapeDtypeStruct((M_pad, D_pad), orig_dtype),
        grid_spec=pltpu.PrefetchScalarGridSpec(
            num_scalar_prefetch=0,
            grid=(M_pad // tm, H_pad // tn),
            in_specs=[
                pl.BlockSpec((tm, D_pad), lambda i, j: (i, 0)),   # x rows
                pl.BlockSpec((D_pad, tn), lambda i, j: (0, j)),   # W1 column chunk
                pl.BlockSpec((1, tn), lambda i, j: (0, j)),       # b1 chunk (fp32)
                pl.BlockSpec((tn, D_pad), lambda i, j: (j, 0)),   # W2 row chunk
                pl.BlockSpec((1, D_pad), lambda i, j: (0, 0)),    # b2 (fp32)
            ],
            out_specs=pl.BlockSpec((tm, D_pad), lambda i, j: (i, 0)),
            scratch_shapes=scratch_shapes,
        ),
        compiler_params=pltpu.CompilerParams(
            dimension_semantics=("parallel", "arbitrary"),
            vmem_limit_bytes=int(vmem_limit),
        ),
        cost_estimate=cost,
    )(x2d, w1p, b1p, w2p, b2p)

    if M_pad == M and D_pad == D:
        return out2d.reshape(B, T, D)
    return out2d[:M, :D].reshape(B, T, D)


def _reference(x, w1, b1, w2, b2, compute_dtype=jnp.bfloat16):
    """Pure-JAX reference mirroring the kernel's mixed-precision recipe."""
    xc = x.astype(compute_dtype)
    h = jnp.dot(xc, w1.astype(compute_dtype), preferred_element_type=jnp.float32)
    h = jnp.maximum(h + b1.astype(jnp.float32), 0.0).astype(compute_dtype)
    y = jnp.dot(h, w2.astype(compute_dtype), preferred_element_type=jnp.float32)
    return (y + b2.astype(jnp.float32)).astype(x.dtype)


if __name__ == "__main__":
    # Small shapes consistent with the module: batch=2, seq=8, em_dims=32.
    B, T, D = 2, 8, 32
    H = 4 * D

    key = jax.random.PRNGKey(0)
    kx, k1, kb1, k2, kb2 = jax.random.split(key, 5)

    x = jax.random.normal(kx, (B, T, D), dtype=jnp.float32)

    # PyTorch Linear weight is (out, in); generate in that shape, transpose to
    # (in, out) for the kernel so that x @ W == PyTorch's x @ weight.T.
    w1_t = jax.random.normal(k1, (H, D), dtype=jnp.float32) * 0.1   # (out, in)
    b1 = jax.random.normal(kb1, (H,), dtype=jnp.float32) * 0.1
    w2_t = jax.random.normal(k2, (D, H), dtype=jnp.float32) * 0.1   # (out, in)
    b2 = jax.random.normal(kb2, (D,), dtype=jnp.float32) * 0.1

    w1 = w1_t.T  # (D, H)
    w2 = w2_t.T  # (H, D)

    # Generation-aware tiling + one-time weight preparation (outside the hot path).
    cfg = ffn_config(D, H)
    params = prepare_ffn_params(w1, b1, w2, b2, tn=cfg["tn"])
    params = jax.block_until_ready(params)

    run = functools.partial(
        feed_forward,
        tm=cfg["tm"], tn=cfg["tn"],
        vmem_cap_bytes=cfg["vmem_cap_bytes"],
        min_row_tiles=cfg["min_row_tiles"],
    )

    # fp32 path (accumulates directly in the fp32 output, no scratch).
    out = jax.block_until_ready(run(x, *params))
    assert out.shape == (B, T, D)

    ref = _reference(x, w1, b1, w2, b2)
    assert jnp.allclose(out, ref, atol=1e-4, rtol=1e-4), float(
        jnp.max(jnp.abs(out - ref)))

    ref_fp32 = jnp.maximum(x @ w1 + b1, 0.0) @ w2 + b2
    assert jnp.allclose(out, ref_fp32, atol=5e-2, rtol=5e-2), float(
        jnp.max(jnp.abs(out - ref_fp32)))

    # bf16 path (fp32 VMEM accumulator scratch, bf16 output/writeback).
    x_bf = x.astype(jnp.bfloat16)
    out_bf = jax.block_until_ready(run(x_bf, *params))
    ref_bf = _reference(x_bf, w1, b1, w2, b2)
    assert out_bf.dtype == jnp.bfloat16
    assert jnp.allclose(out_bf.astype(jnp.float32), ref_bf.astype(jnp.float32),
                        atol=5e-2, rtol=5e-2), float(
        jnp.max(jnp.abs(out_bf.astype(jnp.float32) - ref_bf.astype(jnp.float32))))

    print("KERNEL_OK")
</pallas_src>

<mosaic_0001>
module attributes {stable_mosaic.version = 11 : i64} {
  func.func @ffn_kernel(%arg0: i32, %arg1: i32, %arg2: memref<16x128xbf16, #tpu.memory_space<vmem>>, %arg3: memref<128x128xbf16, #tpu.memory_space<vmem>>, %arg4: memref<1x128xf32, #tpu.memory_space<vmem>>, %arg5: memref<128x128xbf16, #tpu.memory_space<vmem>>, %arg6: memref<1x128xf32, #tpu.memory_space<vmem>>, %arg7: memref<16x128xf32, #tpu.memory_space<vmem>>) attributes {dimension_semantics = [#tpu.dimension_semantics<parallel>, #tpu.dimension_semantics<arbitrary>], iteration_bounds = array<i64: 1, 1>, scalar_prefetch = 0 : i64, scratch_operands = 0 : i64, tpu.core_type = #tpu.core_type<tc>, window_params = [{transform_indices = @transform_0, window_bounds = array<i64: 16, 128>}, {transform_indices = @transform_1, window_bounds = array<i64: 128, 128>}, {transform_indices = @transform_2, window_bounds = array<i64: 1, 128>}, {transform_indices = @transform_3, window_bounds = array<i64: 128, 128>}, {pipeline_mode = #tpu.pipeline_mode<synchronous>, transform_indices = @transform_4, window_bounds = array<i64: 1, 128>}, {transform_indices = @transform_5, window_bounds = array<i64: 16, 128>}]} {
    %c0_i32 = arith.constant 0 : i32
    %0 = arith.cmpi eq, %arg1, %c0_i32 : i32
    %1 = arith.extui %0 : i1 to i32
    %c0_i32_0 = arith.constant 0 : i32
    %2 = arith.cmpi ne, %1, %c0_i32_0 : i32
    scf.if %2 {
      %cst_16 = arith.constant 0.000000e+00 : f32
      %20 = vector.broadcast %cst_16 : f32 to vector<16x128xf32>
      %c0_17 = arith.constant 0 : index
      %c0_18 = arith.constant 0 : index
      %21 = vector.load %arg7[%c0_17, %c0_18] : memref<16x128xf32, #tpu.memory_space<vmem>>, vector<16x128xf32>
      tpu.vector_store %arg7[%c0_17, %c0_18], %20 {strides = array<i32>} : memref<16x128xf32, #tpu.memory_space<vmem>>, vector<16x128xf32>,
    } else {
    }
    %c0 = arith.constant 0 : index
    %c0_1 = arith.constant 0 : index
    %3 = vector.load %arg2[%c0, %c0_1] : memref<16x128xbf16, #tpu.memory_space<vmem>>, vector<16x128xbf16>
    %c0_2 = arith.constant 0 : index
    %c0_3 = arith.constant 0 : index
    %4 = vector.load %arg3[%c0_2, %c0_3] : memref<128x128xbf16, #tpu.memory_space<vmem>>, vector<128x128xbf16>
    %cst = arith.constant dense<0.000000e+00> : vector<16x128xf32>
    %5 = tpu.matmul %3, %4, %cst {dimension_numbers = #tpu.dot_dimension_numbers<[1], [0], [0], [1], [0, 0, 1, 1], [], []>} : vector<16x128xbf16>, vector<128x128xbf16>, vector<16x128xf32> -> vector<16x128xf32>
    %c0_4 = arith.constant 0 : index
    %c0_5 = arith.constant 0 : index
    %6 = vector.load %arg4[%c0_4, %c0_5] : memref<1x128xf32, #tpu.memory_space<vmem>>, vector<1x128xf32>
    %7 = vector.broadcast %6 : vector<1x128xf32> to vector<16x128xf32>
    %8 = arith.addf %5, %7 : vector<16x128xf32>
    %cst_6 = arith.constant 0.000000e+00 : f32
    %9 = vector.broadcast %cst_6 : f32 to vector<16x128xf32>
    %10 = arith.maximumf %8, %9 : vector<16x128xf32>
    %c0_7 = arith.constant 0 : index
    %c0_8 = arith.constant 0 : index
    %11 = vector.load %arg7[%c0_7, %c0_8] : memref<16x128xf32, #tpu.memory_space<vmem>>, vector<16x128xf32>
    %12 = arith.truncf %10 : vector<16x128xf32> to vector<16x128xbf16>
    %c0_9 = arith.constant 0 : index
    %c0_10 = arith.constant 0 : index
    %13 = vector.load %arg5[%c0_9, %c0_10] : memref<128x128xbf16, #tpu.memory_space<vmem>>, vector<128x128xbf16>
    %cst_11 = arith.constant dense<0.000000e+00> : vector<16x128xf32>
    %14 = tpu.matmul %12, %13, %cst_11 {dimension_numbers = #tpu.dot_dimension_numbers<[1], [0], [0], [1], [0, 0, 1, 1], [], []>} : vector<16x128xbf16>, vector<128x128xbf16>, vector<16x128xf32> -> vector<16x128xf32>
    %15 = arith.addf %11, %14 : vector<16x128xf32>
    %c0_12 = arith.constant 0 : index
    %c0_13 = arith.constant 0 : index
    %16 = vector.load %arg7[%c0_12, %c0_13] : memref<16x128xf32, #tpu.memory_space<vmem>>, vector<16x128xf32>
    tpu.vector_store %arg7[%c0_12, %c0_13], %15 {strides = array<i32>} : memref<16x128xf32, #tpu.memory_space<vmem>>, vector<16x128xf32>,
    %c0_i32_14 = arith.constant 0 : i32
    %17 = arith.cmpi eq, %arg1, %c0_i32_14 : i32
    %18 = arith.extui %17 : i1 to i32
    %c0_i32_15 = arith.constant 0 : i32
    %19 = arith.cmpi ne, %18, %c0_i32_15 : i32
    scf.if %19 {
      %c0_16 = arith.constant 0 : index
      %c0_17 = arith.constant 0 : index
      %20 = vector.load %arg7[%c0_16, %c0_17] : memref<16x128xf32, #tpu.memory_space<vmem>>, vector<16x128xf32>
      %c0_18 = arith.constant 0 : index
      %c0_19 = arith.constant 0 : index
      %21 = vector.load %arg6[%c0_18, %c0_19] : memref<1x128xf32, #tpu.memory_space<vmem>>, vector<1x128xf32>
      %22 = vector.broadcast %21 : vector<1x128xf32> to vector<16x128xf32>
      %23 = arith.addf %20, %22 : vector<16x128xf32>
      %c0_20 = arith.constant 0 : index
      %c0_21 = arith.constant 0 : index
      %24 = vector.load %arg7[%c0_20, %c0_21] : memref<16x128xf32, #tpu.memory_space<vmem>>, vector<16x128xf32>
      tpu.vector_store %arg7[%c0_20, %c0_21], %23 {strides = array<i32>} : memref<16x128xf32, #tpu.memory_space<vmem>>, vector<16x128xf32>,
    } else {
    }
    return
  }
  func.func @transform_0(%arg0: i32, %arg1: i32) -> (i32, i32) {
    %c0_i32 = arith.constant 0 : i32
    %c0_i32_0 = arith.constant 0 : i32
    return %arg0, %c0_i32 : i32, i32
  }
  func.func @transform_1(%arg0: i32, %arg1: i32) -> (i32, i32) {
    %c0_i32 = arith.constant 0 : i32
    %c0_i32_0 = arith.constant 0 : i32
    return %c0_i32, %arg1 : i32, i32
  }
  func.func @transform_2(%arg0: i32, %arg1: i32) -> (i32, i32) {
    %c0_i32 = arith.constant 0 : i32
    %c0_i32_0 = arith.constant 0 : i32
    return %c0_i32, %arg1 : i32, i32
  }
  func.func @transform_3(%arg0: i32, %arg1: i32) -> (i32, i32) {
    %c0_i32 = arith.constant 0 : i32
    %c0_i32_0 = arith.constant 0 : i32
    return %arg1, %c0_i32 : i32, i32
  }
  func.func @transform_4(%arg0: i32, %arg1: i32) -> (i32, i32) {
    %c0_i32 = arith.constant 0 : i32
    %c0_i32_0 = arith.constant 0 : i32
    %c0_i32_1 = arith.constant 0 : i32
    return %c0_i32, %c0_i32_0 : i32, i32
  }
  func.func @transform_5(%arg0: i32, %arg1: i32) -> (i32, i32) {
    %c0_i32 = arith.constant 0 : i32
    %c0_i32_0 = arith.constant 0 : i32
    return %arg0, %c0_i32 : i32, i32
  }
}

</mosaic_0001>

<llo_original>
// kernel: feed_forward.1
$region0: #{feed_forward.1}
  #allocation0 [shape = 'u32[]', space=smem, size = 0x4, offset = 0x4, fixed_abs, tag = 'smem constant byte address 0x4 - core index']
  #allocation1 [shape = 'u32[72,128]{1,0:T(1,128)}', space=vmem, size = 0x9000, scoped, tag = 'internal scratch']
  %s0 = inlined_call_operand.vmem [shape: bf16[16,128], index: 0, kind: input, shape index: {}]
  %s1 = inlined_call_operand.hbm [shape: bf16[128,128], index: 1, kind: input, shape index: {}]
  %s2 = inlined_call_operand.vmem [shape: f32[1,128], index: 2, kind: input, shape index: {}]
  %s3 = inlined_call_operand.hbm [shape: bf16[128,128], index: 3, kind: input, shape index: {}]
  %s4 = inlined_call_operand.vmem [shape: f32[1,128], index: 4, kind: input, shape index: {}]
  %s5 = inlined_call_operand.vmem [shape: f32[16,128], index: 5, kind: output, shape index: {}]
  %s6 = sld [smem:[#allocation0]]
  $region46: #{feed_forward.1} parent=0
    _
  %s8 = ssub.s32 1, %s6
  %s9 = scalar_select 0, %s8, %s6
  $region1: #{feed_forward.1} parent=0
    #allocation2 [shape = 'u8[32768]{0}', space=vmem, size = 0x8000, scoped, tag = 'input window, operand 1, single buffered']
    #allocation3 [shape = 's32[1]{0}', space=sflag, size = 0x4, scoped, tag = 'scoped memory for feed_forward.1']
    #allocation4 [shape = 'u8[32768]{0}', space=vmem, size = 0x8000, scoped, tag = 'input window, operand 3, single buffered']
    #allocation5 [shape = 's32[1]{0}', space=sflag, size = 0x4, scoped, tag = 'scoped memory for feed_forward.1']
    %10 = vsyncpa [#allocation3], 0
    %11 = vsyncpa [#allocation5], 0
    // Predicated region
    $region2: #{feed_forward.1} parent=1 // pred_check
      _
    $region3: #{feed_forward.1} parent=1 // pred_check_branch
      %13 = sbr.rel (0) target = $region5
    $region4: #{feed_forward.1} parent=1 // pred_region
      _
    $region5: #{feed_forward.1} parent=1 // pred_fallthru
      _
    // Predicated region
    $region6: #{feed_forward.1} parent=1 // pred_check
      _
    $region7: #{feed_forward.1} parent=1 // pred_check_branch
      %15 = sbr.rel (0) target = $region9
    $region8: #{feed_forward.1} parent=1 // pred_region
      %17 = vsyncadd [#allocation3], 0
      %s18 = sshll.u32 %s1, 4
      %s19 = int_to_ptr.hbm [resolvable:$true] %s18
      %s20 = sshll.u32 [#allocation2], 4
      %s21 = int_to_ptr.vmem [resolvable:$true] %s20
      %26 = dma.hbm_to_vmem [thread:$0]  %s19, 1024, %s21, [#allocation3], 64, 64, 4
    $region9: #{feed_forward.1} parent=1 // pred_fallthru
      _
    // Predicated region
    $region10: #{feed_forward.1} parent=1 // pred_check
      _
    $region11: #{feed_forward.1} parent=1 // pred_check_branch
      %28 = sbr.rel (0) target = $region13
    $region12: #{feed_forward.1} parent=1 // pred_region
      _
    $region13: #{feed_forward.1} parent=1 // pred_fallthru
      _
    // Predicated region
    $region14: #{feed_forward.1} parent=1 // pred_check
      _
    $region15: #{feed_forward.1} parent=1 // pred_check_branch
      %30 = sbr.rel (0) target = $region17
    $region16: #{feed_forward.1} parent=1 // pred_region
      %32 = vsyncadd [#allocation5], 0
      %s33 = sshll.u32 %s3, 4
      %s34 = int_to_ptr.hbm [resolvable:$true] %s33
      %s35 = sshll.u32 [#allocation4], 4
      %s36 = int_to_ptr.vmem [resolvable:$true] %s35
      %41 = dma.hbm_to_vmem [thread:$0]  %s34, 1024, %s36, [#allocation5], 64, 64, 4
    $region17: #{feed_forward.1} parent=1 // pred_fallthru
      _
    // Predicated region
    $region18: #{feed_forward.1} parent=1 // pred_check
      _
    $region19: #{feed_forward.1} parent=1 // pred_check_branch
      %43 = sbr.rel (0) target = $region21
    $region20: #{feed_forward.1} parent=1 // pred_region
      _
    $region21: #{feed_forward.1} parent=1 // pred_fallthru
      _
    // Predicated region
    $region22: #{feed_forward.1} parent=1 // pred_check
      _
    $region23: #{feed_forward.1} parent=1 // pred_check_branch
      %45 = sbr.rel (0) target = $region25
    $region24: #{feed_forward.1} parent=1 // pred_region
      %47 = dma.done [#allocation3], 1024
    $region25: #{feed_forward.1} parent=1 // pred_fallthru
      _
    // Predicated region
    $region26: #{feed_forward.1} parent=1 // pred_check
      _
    $region27: #{feed_forward.1} parent=1 // pred_check_branch
      %49 = sbr.rel (0) target = $region29
    $region28: #{feed_forward.1} parent=1 // pred_region
      %51 = dma.done [#allocation5], 1024
    $region29: #{feed_forward.1} parent=1 // pred_fallthru
      _
    %p52 = scmp.eq.s32.totalorder 0, 0
    // Predicated region
    $region30: #{feed_forward.1} parent=1 // pred_check
      %p53 = pneg %p52
    $region31: #{feed_forward.1} parent=1 // pred_check_branch
      %55 = sbr.rel (%p53) target = $region33
    $region32: #{feed_forward.1} parent=1 // pred_region
      %56 = vst [vmem:[%s5] sm:$0xff] 0.0
      %57 = vst [vmem:[%s5 + $0x8] sm:$0xff] 0.0
    $region33: #{feed_forward.1} parent=1 // pred_fallthru
      _
    %v58 = vld [vmem:[%s0] sm:$0xf]
    %v59 = vld [vmem:[%s0 + $0x4] sm:$0xf]
    %v60 = vld [vmem:[#allocation2] sm:$0xf]
    %v61 = vld [vmem:[#allocation2 + $0x4] sm:$0xf]
    %v62 = vld [vmem:[#allocation2 + $0x8] sm:$0xf]
    %v63 = vld [vmem:[#allocation2 + $0xc] sm:$0xf]
    %v64 = vld [vmem:[#allocation2 + $0x10] sm:$0xf]
    %v65 = vld [vmem:[#allocation2 + $0x14] sm:$0xf]
    %v66 = vld [vmem:[#allocation2 + $0x18] sm:$0xf]
    %v67 = vld [vmem:[#allocation2 + $0x1c] sm:$0xf]
    %v68 = vld [vmem:[#allocation2 + $0x20] sm:$0xf]
    %v69 = vld [vmem:[#allocation2 + $0x24] sm:$0xf]
    %v70 = vld [vmem:[#allocation2 + $0x28] sm:$0xf]
    %v71 = vld [vmem:[#allocation2 + $0x2c] sm:$0xf]
    %v72 = vld [vmem:[#allocation2 + $0x30] sm:$0xf]
    %v73 = vld [vmem:[#allocation2 + $0x34] sm:$0xf]
    %v74 = vld [vmem:[#allocation2 + $0x38] sm:$0xf]
    %v75 = vld [vmem:[#allocation2 + $0x3c] sm:$0xf]
    %v76 = vld [vmem:[%s2] sm:$0x1]
    %v78 = vperm.slane %v76, 0
    %v82 = vunpack.c.l.b16 %v58
    %v83 = vunpack.c.l.b16 %v59
    %v84 = vpack.c.b16 %v83, %v82
    %v102 = vunpack.c.l.b16 %v60
    %v103 = vunpack.c.l.b16 %v61
    %v104 = vunpack.c.l.b16 %v62
    %v105 = vunpack.c.l.b16 %v63
    %v106 = vunpack.c.l.b16 %v64
    %v107 = vunpack.c.l.b16 %v65
    %v108 = vunpack.c.l.b16 %v66
    %v109 = vunpack.c.l.b16 %v67
    %v110 = vunpack.c.l.b16 %v68
    %v111 = vunpack.c.l.b16 %v69
    %v112 = vunpack.c.l.b16 %v70
    %v113 = vunpack.c.l.b16 %v71
    %v114 = vunpack.c.l.b16 %v72
    %v115 = vunpack.c.l.b16 %v73
    %v116 = vunpack.c.l.b16 %v74
    %v117 = vunpack.c.l.b16 %v75
    %v118 = vpack.c.b16 %v103, %v102
    %v119 = vpack.c.b16 %v105, %v104
    %v120 = vpack.c.b16 %v107, %v106
    %v121 = vpack.c.b16 %v109, %v108
    %v122 = vpack.c.b16 %v111, %v110
    %v123 = vpack.c.b16 %v113, %v112
    %v124 = vpack.c.b16 %v115, %v114
    %v125 = vpack.c.b16 %v117, %v116
    %134 = vmatpush.bf16.msra.mxu0 %v125
    %135 = vmatpush.bf16.msra.mxu0 %v124
    %136 = vmatpush.bf16.msra.mxu0 %v123
    %137 = vmatpush.bf16.msra.mxu0 %v122
    %138 = vmatpush.bf16.msra.mxu0 %v121
    %139 = vmatpush.bf16.msra.mxu0 %v120
    %140 = vmatpush.bf16.msra.mxu0 %v119
    %141 = vmatpush.bf16.msra.mxu0 %v118
    %142 = vmatmul.bf16.gmra.mxu0 %v84
    %v143 = vpop.f32.mrf.mxu0
    %v144 = vadd.f32 %v78, %v143
    %v145 = vpop.f32.mrf.mxu0
    %v146 = vadd.f32 %v78, %v145
    %147 = vdwg.mxu0
    %v148 = vmax.f32 %v144, 0.0
    %v149 = vmax.f32 %v146, 0.0
    %v150 = vld [vmem:[%s5] sm:$0xff]
    %v151 = vld [vmem:[%s5 + $0x8] sm:$0xff]
    %v152 = vpack.c.bf16 %v149, %v148
    %v153 = vld [vmem:[#allocation4] sm:$0xf]
    %v154 = vld [vmem:[#allocation4 + $0x4] sm:$0xf]
    %v155 = vld [vmem:[#allocation4 + $0x8] sm:$0xf]
    %v156 = vld [vmem:[#allocation4 + $0xc] sm:$0xf]
    %v157 = vld [vmem:[#allocation4 + $0x10] sm:$0xf]
    %v158 = vld [vmem:[#allocation4 + $0x14] sm:$0xf]
    %v159 = vld [vmem:[#allocation4 + $0x18] sm:$0xf]
    %v160 = vld [vmem:[#allocation4 + $0x1c] sm:$0xf]
    %v161 = vld [vmem:[#allocation4 + $0x20] sm:$0xf]
    %v162 = vld [vmem:[#allocation4 + $0x24] sm:$0xf]
    %v163 = vld [vmem:[#allocation4 + $0x28] sm:$0xf]
    %v164 = vld [vmem:[#allocation4 + $0x2c] sm:$0xf]
    %v165 = vld [vmem:[#allocation4 + $0x30] sm:$0xf]
    %v166 = vld [vmem:[#allocation4 + $0x34] sm:$0xf]
    %v167 = vld [vmem:[#allocation4 + $0x38] sm:$0xf]
    %v168 = vld [vmem:[#allocation4 + $0x3c] sm:$0xf]
    %v185 = vunpack.c.l.b16 %v153
    %v186 = vunpack.c.l.b16 %v154
    %v187 = vunpack.c.l.b16 %v155
    %v188 = vunpack.c.l.b16 %v156
    %v189 = vunpack.c.l.b16 %v157
    %v190 = vunpack.c.l.b16 %v158
    %v191 = vunpack.c.l.b16 %v159
    %v192 = vunpack.c.l.b16 %v160
    %v193 = vunpack.c.l.b16 %v161
    %v194 = vunpack.c.l.b16 %v162
    %v195 = vunpack.c.l.b16 %v163
    %v196 = vunpack.c.l.b16 %v164
    %v197 = vunpack.c.l.b16 %v165
    %v198 = vunpack.c.l.b16 %v166
    %v199 = vunpack.c.l.b16 %v167
    %v200 = vunpack.c.l.b16 %v168
    %v201 = vpack.c.b16 %v186, %v185
    %v202 = vpack.c.b16 %v188, %v187
    %v203 = vpack.c.b16 %v190, %v189
    %v204 = vpack.c.b16 %v192, %v191
    %v205 = vpack.c.b16 %v194, %v193
    %v206 = vpack.c.b16 %v196, %v195
    %v207 = vpack.c.b16 %v198, %v197
    %v208 = vpack.c.b16 %v200, %v199
    %217 = vmatpush.bf16.msra.mxu0 %v208
    %218 = vmatpush.bf16.msra.mxu0 %v207
    %219 = vmatpush.bf16.msra.mxu0 %v206
    %220 = vmatpush.bf16.msra.mxu0 %v205
    %221 = vmatpush.bf16.msra.mxu0 %v204
    %222 = vmatpush.bf16.msra.mxu0 %v203
    %223 = vmatpush.bf16.msra.mxu0 %v202
    %224 = vmatpush.bf16.msra.mxu0 %v201
    %225 = vmatmul.bf16.gmra.mxu0 %v152
    %v226 = vpop.f32.mrf.mxu0
    %v227 = vadd.f32 0.0, %v226
    %v228 = vpop.f32.mrf.mxu0
    %v229 = vadd.f32 0.0, %v228
    %230 = vdwg.mxu0
    %v231 = vadd.f32 %v150, %v227
    %v232 = vadd.f32 %v151, %v229
    %233 = vst [vmem:[%s5] sm:$0xff] %v231
    %234 = vst [vmem:[%s5 + $0x8] sm:$0xff] %v232
    // Predicated region
    $region34: #{feed_forward.1} parent=1 // pred_check
      %p235 = pneg %p52
    $region35: #{feed_forward.1} parent=1 // pred_check_branch
      %237 = sbr.rel (%p235) target = $region37
    $region36: #{feed_forward.1} parent=1 // pred_region
      %v238 = vld [vmem:[%s5] sm:$0xff]
      %v239 = vld [vmem:[%s5 + $0x8] sm:$0xff]
      %v240 = vld [vmem:[%s4] sm:$0x1]
      %v242 = vperm.slane %v240, 0
      %v244 = vadd.f32 %v238, %v242
      %v245 = vadd.f32 %v239, %v242
      %246 = vst [vmem:[%s5] sm:$0xff] %v244
      %247 = vst [vmem:[%s5 + $0x8] sm:$0xff] %v245
    $region37: #{feed_forward.1} parent=1 // pred_fallthru
      _
    // Predicated region
    $region38: #{feed_forward.1} parent=1 // pred_check
      _
    $region39: #{feed_forward.1} parent=1 // pred_check_branch
      %249 = sbr.rel (0) target = $region41
    $region40: #{feed_forward.1} parent=1 // pred_region
      _
    $region41: #{feed_forward.1} parent=1 // pred_fallthru
      _
    // Predicated region
    $region42: #{feed_forward.1} parent=1 // pred_check
      _
    $region43: #{feed_forward.1} parent=1 // pred_check_branch
      %251 = sbr.rel (0) target = $region45
    $region44: #{feed_forward.1} parent=1 // pred_region
      _
    $region45: #{feed_forward.1} parent=1 // pred_fallthru
      _
    %252 = vsyncpa [#allocation3], 1
    %253 = vsyncpa [#allocation5], 1

</llo_original>
